<compile_context>
chip_gen: v6e
topology: v6e:2x2x1
jax: 0.10.0
libtpu: 0.0.40
codegen_flags: <defaults>
</compile_context>

<pallas_src>
import jax
import jax.numpy as jnp
from jax.experimental import pallas as pl
from jax.experimental.pallas import tpu as pltpu


def _stable_softplus(x):
    # log1p(exp(x)) without overflow for large x (mathematically identical).
    return jnp.maximum(x, 0.0) + jnp.log1p(jnp.exp(-jnp.abs(x)))


def vae_kernel(x_ref, eps_ref,
               w1_ref, b1_ref, w2_ref, b2_ref, w3_ref, b3_ref,
               wd1_ref, bd1_ref, wd2_ref, bd2_ref,
               xhat_ref, muvar_ref):
    lat_p = eps_ref.shape[-1]          # padded latent width (multiple of 128)
    mm_dtype = w1_ref.dtype            # matmul operand dtype (f32 or bf16)

    # ---- encoder: input -> hidden -> hidden -> fused (mu | raw_var) ----
    x = x_ref[...]                     # already cast to mm_dtype in wrapper
    h = jnp.dot(x, w1_ref[...], preferred_element_type=jnp.float32) + b1_ref[...]
    h = jnp.maximum(h, 0.0)
    h = jnp.dot(h.astype(mm_dtype), w2_ref[...],
                preferred_element_type=jnp.float32) + b2_ref[...]
    h = jnp.maximum(h, 0.0)
    enc = jnp.dot(h.astype(mm_dtype), w3_ref[...],
                  preferred_element_type=jnp.float32) + b3_ref[...]

    # vreg-aligned split: mu in lanes [0, lat_p), raw_var in lanes [lat_p, 2*lat_p)
    mu = enc[:, :lat_p]
    var = _stable_softplus(enc[:, lat_p:])

    # ---- reparameterization: z = mu + eps * sqrt(var)  (f32 elementwise) ----
    z = mu + eps_ref[...] * jnp.sqrt(var)

    # ---- decoder: latent -> hidden (ReLU) -> input (Sigmoid) ----
    hd = jnp.dot(z.astype(mm_dtype), wd1_ref[...],
                 preferred_element_type=jnp.float32) + bd1_ref[...]
    hd = jnp.maximum(hd, 0.0)
    logits = jnp.dot(hd.astype(mm_dtype), wd2_ref[...],
                     preferred_element_type=jnp.float32) + bd2_ref[...]

    # ---- lane-dense stores ----
    xhat_ref[...] = jax.nn.sigmoid(logits)
    muvar_ref[:, :lat_p] = mu
    muvar_ref[:, lat_p:] = var


def _round_up(x, m):
    return (x + m - 1) // m * m


def _pad2(a, rows, cols):
    return jnp.zeros((rows, cols), a.dtype).at[:a.shape[0], :a.shape[1]].set(a)


def init_params(key, input_dim, hidden_dim, latent_dim):
    """Deterministic synthetic parameters (weights stored as [in, out])."""
    ks = jax.random.split(key, 5)

    def lin(k, fan_in, fan_out):
        kw, kb = jax.random.split(k)
        bound = 1.0 / jnp.sqrt(fan_in)
        w = jax.random.uniform(kw, (fan_in, fan_out), jnp.float32, -bound, bound)
        b = jax.random.uniform(kb, (1, fan_out), jnp.float32, -bound, bound)
        return w, b

    w1, b1 = lin(ks[0], input_dim, hidden_dim)
    w2, b2 = lin(ks[1], hidden_dim, hidden_dim)
    w3, b3 = lin(ks[2], hidden_dim, 2 * latent_dim)   # fused mu/var layer
    wd1, bd1 = lin(ks[3], latent_dim, hidden_dim)
    wd2, bd2 = lin(ks[4], hidden_dim, input_dim)
    return (w1, b1, w2, b2, w3, b3, wd1, bd1, wd2, bd2)


def vae_forward(x, eps, params, *, matmul_dtype=jnp.float32, batch_tile=256):
    """Pallas VAE forward. Returns (x_hat, mu, var) at the unpadded shapes.

    batch_tile: rows per grid step.  256 keeps the per-step activation
    buffers (double-buffered) well under v7x's 32 MiB scoped VMEM for the
    dims used here; re-derive if feature dims grow large.
    """
    batch, input_dim = x.shape
    latent_dim = eps.shape[1]
    w1, b1, w2, b2, w3, b3, wd1, bd1, wd2, bd2 = params
    hidden_dim = w1.shape[1]

    # ---- pad feature axes to multiples of 128 (lane-dense everywhere) ----
    d_p = _round_up(input_dim, 128)
    h_p = _round_up(hidden_dim, 128)
    l_p = _round_up(latent_dim, 128)

    tb = min(_round_up(batch, 8), batch_tile)
    b_p = _round_up(batch, tb)

    x_p = _pad2(x, b_p, d_p).astype(matmul_dtype)
    eps_p = _pad2(eps, b_p, l_p)                      # stays f32 (elementwise)

    w1_p = _pad2(w1, d_p, h_p).astype(matmul_dtype)
    b1_p = _pad2(b1, 1, h_p)
    w2_p = _pad2(w2, h_p, h_p).astype(matmul_dtype)
    b2_p = _pad2(b2, 1, h_p)

    # fused encoder head: mu columns at [0, l_p), var columns at [l_p, 2*l_p)
    w3_p = jnp.zeros((h_p, 2 * l_p), jnp.float32)
    w3_p = w3_p.at[:hidden_dim, :latent_dim].set(w3[:, :latent_dim])
    w3_p = w3_p.at[:hidden_dim, l_p:l_p + latent_dim].set(w3[:, latent_dim:])
    w3_p = w3_p.astype(matmul_dtype)
    b3_p = jnp.zeros((1, 2 * l_p), jnp.float32)
    b3_p = b3_p.at[:, :latent_dim].set(b3[:, :latent_dim])
    b3_p = b3_p.at[:, l_p:l_p + latent_dim].set(b3[:, latent_dim:])

    wd1_p = _pad2(wd1, l_p, h_p).astype(matmul_dtype)
    bd1_p = _pad2(bd1, 1, h_p)
    wd2_p = _pad2(wd2, h_p, d_p).astype(matmul_dtype)
    bd2_p = _pad2(bd2, 1, d_p)

    # ---- grid & specs: stream batch tiles, keep weights resident ----
    def row_spec(cols):
        return pl.BlockSpec((tb, cols), lambda i: (i, 0))

    def resident(arr):
        return pl.BlockSpec(arr.shape, lambda i: (0, 0))

    in_arrays = (x_p, eps_p, w1_p, b1_p, w2_p, b2_p, w3_p, b3_p,
                 wd1_p, bd1_p, wd2_p, bd2_p)
    in_specs = [
        row_spec(d_p), row_spec(l_p),
        resident(w1_p), resident(b1_p), resident(w2_p), resident(b2_p),
        resident(w3_p), resident(b3_p),
        resident(wd1_p), resident(bd1_p), resident(wd2_p), resident(bd2_p),
    ]
    out_specs = (row_spec(d_p), row_spec(2 * l_p))

    # advisory cost estimate (per review): helps XLA overlap the custom call
    flops = 2 * b_p * (d_p * h_p + h_p * h_p + h_p * 2 * l_p
                       + l_p * h_p + h_p * d_p)
    transcendentals = b_p * (d_p + 3 * l_p)
    bytes_accessed = sum(int(a.size) * a.dtype.itemsize for a in in_arrays)
    bytes_accessed += (b_p * d_p + b_p * 2 * l_p) * 4

    xhat_p, muvar_p = pl.pallas_call(
        vae_kernel,
        out_shape=(
            jax.ShapeDtypeStruct((b_p, d_p), jnp.float32),      # x_hat (padded)
            jax.ShapeDtypeStruct((b_p, 2 * l_p), jnp.float32),  # [mu | var]
        ),
        grid_spec=pltpu.PrefetchScalarGridSpec(
            num_scalar_prefetch=0,
            grid=(b_p // tb,),
            in_specs=in_specs,
            out_specs=out_specs,
        ),
        compiler_params=pltpu.CompilerParams(
            dimension_semantics=("parallel",),   # 2-TC sharding on v7x
        ),
        cost_estimate=pl.CostEstimate(
            flops=flops,
            transcendentals=transcendentals,
            bytes_accessed=bytes_accessed,
        ),
    )(*in_arrays)

    # slice padding back off
    x_hat = xhat_p[:batch, :input_dim]
    mu = muvar_p[:batch, :latent_dim]
    var = muvar_p[:batch, l_p:l_p + latent_dim]
    return x_hat, mu, var


if __name__ == "__main__":
    batch, input_dim, hidden_dim, latent_dim = 8, 64, 32, 8

    key = jax.random.PRNGKey(0)
    k_x, k_eps, k_p = jax.random.split(key, 3)

    x = jax.random.uniform(k_x, (batch, input_dim), jnp.float32)
    # eps plays the role of torch.randn_like(mu) in the reparameterization
    # trick (the torch RNG stream cannot be reproduced bit-exactly anyway).
    eps = jax.random.normal(k_eps, (batch, latent_dim), jnp.float32)
    params = init_params(k_p, input_dim, hidden_dim, latent_dim)

    # ---- f32 run (bit-accurate check) ----
    x_hat, mu, var = jax.block_until_ready(
        vae_forward(x, eps, params, matmul_dtype=jnp.float32))

    # pure-JAX reference
    w1, b1, w2, b2, w3, b3, wd1, bd1, wd2, bd2 = params
    h = jnp.maximum(x @ w1 + b1, 0.0)
    h = jnp.maximum(h @ w2 + b2, 0.0)
    enc = h @ w3 + b3
    mu_ref = enc[:, :latent_dim]
    var_ref = _stable_softplus(enc[:, latent_dim:])
    z = mu_ref + eps * jnp.sqrt(var_ref)
    hd = jnp.maximum(z @ wd1 + bd1, 0.0)
    x_hat_ref = jax.nn.sigmoid(hd @ wd2 + bd2)

    assert x_hat.shape == (batch, input_dim)
    assert mu.shape == (batch, latent_dim) and var.shape == (batch, latent_dim)
    assert jnp.allclose(x_hat, x_hat_ref, atol=1e-5)
    assert jnp.allclose(mu, mu_ref, atol=1e-5)
    assert jnp.allclose(var, var_ref, atol=1e-5)
    assert bool(jnp.all(var >= 0.0))

    # ---- bf16-operand run (v6e/v7x fast path; f32 accumulation/elementwise) ----
    x_hat_bf, mu_bf, var_bf = jax.block_until_ready(
        vae_forward(x, eps, params, matmul_dtype=jnp.bfloat16))
    assert bool(jnp.all(jnp.isfinite(x_hat_bf)))
    assert jnp.allclose(x_hat_bf, x_hat_ref, atol=8e-2)
    assert jnp.allclose(mu_bf, mu_ref, atol=8e-2)
    assert jnp.allclose(var_bf, var_ref, atol=8e-2)

    print("KERNEL_OK")
</pallas_src>

<mosaic_0001>
module attributes {stable_mosaic.version = 11 : i64} {
  func.func @vae_kernel(%arg0: i32, %arg1: memref<8x128xf32, #tpu.memory_space<vmem>>, %arg2: memref<8x128xf32, #tpu.memory_space<vmem>>, %arg3: memref<128x128xf32, #tpu.memory_space<vmem>>, %arg4: memref<1x128xf32, #tpu.memory_space<vmem>>, %arg5: memref<128x128xf32, #tpu.memory_space<vmem>>, %arg6: memref<1x128xf32, #tpu.memory_space<vmem>>, %arg7: memref<128x256xf32, #tpu.memory_space<vmem>>, %arg8: memref<1x256xf32, #tpu.memory_space<vmem>>, %arg9: memref<128x128xf32, #tpu.memory_space<vmem>>, %arg10: memref<1x128xf32, #tpu.memory_space<vmem>>, %arg11: memref<128x128xf32, #tpu.memory_space<vmem>>, %arg12: memref<1x128xf32, #tpu.memory_space<vmem>>, %arg13: memref<8x128xf32, #tpu.memory_space<vmem>>, %arg14: memref<8x256xf32, #tpu.memory_space<vmem>>) attributes {dimension_semantics = [#tpu.dimension_semantics<parallel>], iteration_bounds = array<i64: 1>, scalar_prefetch = 0 : i64, scratch_operands = 0 : i64, tpu.core_type = #tpu.core_type<tc>, window_params = [{transform_indices = @transform_0, window_bounds = array<i64: 8, 128>}, {transform_indices = @transform_1, window_bounds = array<i64: 8, 128>}, {pipeline_mode = #tpu.pipeline_mode<synchronous>, transform_indices = @transform_2, window_bounds = array<i64: 128, 128>}, {pipeline_mode = #tpu.pipeline_mode<synchronous>, transform_indices = @transform_3, window_bounds = array<i64: 1, 128>}, {pipeline_mode = #tpu.pipeline_mode<synchronous>, transform_indices = @transform_4, window_bounds = array<i64: 128, 128>}, {pipeline_mode = #tpu.pipeline_mode<synchronous>, transform_indices = @transform_5, window_bounds = array<i64: 1, 128>}, {pipeline_mode = #tpu.pipeline_mode<synchronous>, transform_indices = @transform_6, window_bounds = array<i64: 128, 256>}, {pipeline_mode = #tpu.pipeline_mode<synchronous>, transform_indices = @transform_7, window_bounds = array<i64: 1, 256>}, {pipeline_mode = #tpu.pipeline_mode<synchronous>, transform_indices = @transform_8, window_bounds = array<i64: 128, 128>}, {pipeline_mode = #tpu.pipeline_mode<synchronous>, transform_indices = @transform_9, window_bounds = array<i64: 1, 128>}, {pipeline_mode = #tpu.pipeline_mode<synchronous>, transform_indices = @transform_10, window_bounds = array<i64: 128, 128>}, {pipeline_mode = #tpu.pipeline_mode<synchronous>, transform_indices = @transform_11, window_bounds = array<i64: 1, 128>}, {transform_indices = @transform_12, window_bounds = array<i64: 8, 128>}, {transform_indices = @transform_13, window_bounds = array<i64: 8, 256>}]} {
    %c0 = arith.constant 0 : index
    %c0_0 = arith.constant 0 : index
    %0 = vector.load %arg1[%c0, %c0_0] : memref<8x128xf32, #tpu.memory_space<vmem>>, vector<8x128xf32>
    %c0_1 = arith.constant 0 : index
    %c0_2 = arith.constant 0 : index
    %1 = vector.load %arg3[%c0_1, %c0_2] : memref<128x128xf32, #tpu.memory_space<vmem>>, vector<128x128xf32>
    %cst = arith.constant dense<0.000000e+00> : vector<8x128xf32>
    %2 = tpu.matmul %0, %1, %cst {dimension_numbers = #tpu.dot_dimension_numbers<[1], [0], [0], [1], [0, 0, 1, 1], [], []>} : vector<8x128xf32>, vector<128x128xf32>, vector<8x128xf32> -> vector<8x128xf32>
    %c0_3 = arith.constant 0 : index
    %c0_4 = arith.constant 0 : index
    %3 = vector.load %arg4[%c0_3, %c0_4] : memref<1x128xf32, #tpu.memory_space<vmem>>, vector<1x128xf32>
    %4 = vector.broadcast %3 : vector<1x128xf32> to vector<8x128xf32>
    %5 = arith.addf %2, %4 : vector<8x128xf32>
    %cst_5 = arith.constant 0.000000e+00 : f32
    %6 = vector.broadcast %cst_5 : f32 to vector<8x128xf32>
    %7 = arith.maximumf %5, %6 : vector<8x128xf32>
    %c0_6 = arith.constant 0 : index
    %c0_7 = arith.constant 0 : index
    %8 = vector.load %arg5[%c0_6, %c0_7] : memref<128x128xf32, #tpu.memory_space<vmem>>, vector<128x128xf32>
    %cst_8 = arith.constant dense<0.000000e+00> : vector<8x128xf32>
    %9 = tpu.matmul %7, %8, %cst_8 {dimension_numbers = #tpu.dot_dimension_numbers<[1], [0], [0], [1], [0, 0, 1, 1], [], []>} : vector<8x128xf32>, vector<128x128xf32>, vector<8x128xf32> -> vector<8x128xf32>
    %c0_9 = arith.constant 0 : index
    %c0_10 = arith.constant 0 : index
    %10 = vector.load %arg6[%c0_9, %c0_10] : memref<1x128xf32, #tpu.memory_space<vmem>>, vector<1x128xf32>
    %11 = vector.broadcast %10 : vector<1x128xf32> to vector<8x128xf32>
    %12 = arith.addf %9, %11 : vector<8x128xf32>
    %cst_11 = arith.constant 0.000000e+00 : f32
    %13 = vector.broadcast %cst_11 : f32 to vector<8x128xf32>
    %14 = arith.maximumf %12, %13 : vector<8x128xf32>
    %c0_12 = arith.constant 0 : index
    %c0_13 = arith.constant 0 : index
    %15 = vector.load %arg7[%c0_12, %c0_13] : memref<128x256xf32, #tpu.memory_space<vmem>>, vector<128x256xf32>
    %cst_14 = arith.constant dense<0.000000e+00> : vector<8x256xf32>
    %16 = tpu.matmul %14, %15, %cst_14 {dimension_numbers = #tpu.dot_dimension_numbers<[1], [0], [0], [1], [0, 0, 1, 1], [], []>} : vector<8x128xf32>, vector<128x256xf32>, vector<8x256xf32> -> vector<8x256xf32>
    %c0_15 = arith.constant 0 : index
    %c0_16 = arith.constant 0 : index
    %17 = vector.load %arg8[%c0_15, %c0_16] : memref<1x256xf32, #tpu.memory_space<vmem>>, vector<1x256xf32>
    %18 = vector.broadcast %17 : vector<1x256xf32> to vector<8x256xf32>
    %19 = arith.addf %16, %18 : vector<8x256xf32>
    %20 = vector.extract_strided_slice %19 {offsets = [0, 0], sizes = [8, 128], strides = [1, 1]} : vector<8x256xf32> to vector<8x128xf32>
    %21 = vector.extract_strided_slice %19 {offsets = [0, 128], sizes = [8, 128], strides = [1, 1]} : vector<8x256xf32> to vector<8x128xf32>
    %cst_17 = arith.constant 0.000000e+00 : f32
    %22 = vector.broadcast %cst_17 : f32 to vector<8x128xf32>
    %23 = arith.maximumf %21, %22 : vector<8x128xf32>
    %24 = math.absf %21 : vector<8x128xf32>
    %cst_18 = arith.constant 0.000000e+00 : f32
    %25 = vector.broadcast %cst_18 : f32 to vector<8x128xf32>
    %26 = arith.subf %25, %24 : vector<8x128xf32>
    %27 = math.exp %26 : vector<8x128xf32>
    %28 = math.log1p %27 : vector<8x128xf32>
    %29 = arith.addf %23, %28 : vector<8x128xf32>
    %c0_19 = arith.constant 0 : index
    %c0_20 = arith.constant 0 : index
    %30 = vector.load %arg2[%c0_19, %c0_20] : memref<8x128xf32, #tpu.memory_space<vmem>>, vector<8x128xf32>
    %31 = math.sqrt %29 : vector<8x128xf32>
    %32 = arith.mulf %30, %31 : vector<8x128xf32>
    %33 = arith.addf %20, %32 : vector<8x128xf32>
    %c0_21 = arith.constant 0 : index
    %c0_22 = arith.constant 0 : index
    %34 = vector.load %arg9[%c0_21, %c0_22] : memref<128x128xf32, #tpu.memory_space<vmem>>, vector<128x128xf32>
    %cst_23 = arith.constant dense<0.000000e+00> : vector<8x128xf32>
    %35 = tpu.matmul %33, %34, %cst_23 {dimension_numbers = #tpu.dot_dimension_numbers<[1], [0], [0], [1], [0, 0, 1, 1], [], []>} : vector<8x128xf32>, vector<128x128xf32>, vector<8x128xf32> -> vector<8x128xf32>
    %c0_24 = arith.constant 0 : index
    %c0_25 = arith.constant 0 : index
    %36 = vector.load %arg10[%c0_24, %c0_25] : memref<1x128xf32, #tpu.memory_space<vmem>>, vector<1x128xf32>
    %37 = vector.broadcast %36 : vector<1x128xf32> to vector<8x128xf32>
    %38 = arith.addf %35, %37 : vector<8x128xf32>
    %cst_26 = arith.constant 0.000000e+00 : f32
    %39 = vector.broadcast %cst_26 : f32 to vector<8x128xf32>
    %40 = arith.maximumf %38, %39 : vector<8x128xf32>
    %c0_27 = arith.constant 0 : index
    %c0_28 = arith.constant 0 : index
    %41 = vector.load %arg11[%c0_27, %c0_28] : memref<128x128xf32, #tpu.memory_space<vmem>>, vector<128x128xf32>
    %cst_29 = arith.constant dense<0.000000e+00> : vector<8x128xf32>
    %42 = tpu.matmul %40, %41, %cst_29 {dimension_numbers = #tpu.dot_dimension_numbers<[1], [0], [0], [1], [0, 0, 1, 1], [], []>} : vector<8x128xf32>, vector<128x128xf32>, vector<8x128xf32> -> vector<8x128xf32>
    %c0_30 = arith.constant 0 : index
    %c0_31 = arith.constant 0 : index
    %43 = vector.load %arg12[%c0_30, %c0_31] : memref<1x128xf32, #tpu.memory_space<vmem>>, vector<1x128xf32>
    %44 = vector.broadcast %43 : vector<1x128xf32> to vector<8x128xf32>
    %45 = arith.addf %42, %44 : vector<8x128xf32>
    %46 = arith.negf %45 : vector<8x128xf32>
    %47 = math.exp %46 : vector<8x128xf32>
    %cst_32 = arith.constant 1.000000e+00 : f32
    %48 = vector.broadcast %cst_32 : f32 to vector<8x128xf32>
    %49 = arith.addf %48, %47 : vector<8x128xf32>
    %50 = arith.divf %48, %49 : vector<8x128xf32>
    %c0_33 = arith.constant 0 : index
    %c0_34 = arith.constant 0 : index
    %51 = vector.load %arg13[%c0_33, %c0_34] : memref<8x128xf32, #tpu.memory_space<vmem>>, vector<8x128xf32>
    tpu.vector_store %arg13[%c0_33, %c0_34], %50 {strides = array<i32>} : memref<8x128xf32, #tpu.memory_space<vmem>>, vector<8x128xf32>,
    %c0_35 = arith.constant 0 : index
    %c0_36 = arith.constant 0 : index
    %52 = vector.load %arg14[%c0_35, %c0_36] : memref<8x256xf32, #tpu.memory_space<vmem>>, vector<8x128xf32>
    tpu.vector_store %arg14[%c0_35, %c0_36], %20 {strides = array<i32>} : memref<8x256xf32, #tpu.memory_space<vmem>>, vector<8x128xf32>,
    %c0_37 = arith.constant 0 : index
    %c128 = arith.constant 128 : index
    %53 = vector.load %arg14[%c0_37, %c128] : memref<8x256xf32, #tpu.memory_space<vmem>>, vector<8x128xf32>
    tpu.vector_store %arg14[%c0_37, %c128], %29 {strides = array<i32>} : memref<8x256xf32, #tpu.memory_space<vmem>>, vector<8x128xf32>,
    return
  }
  func.func @transform_0(%arg0: i32) -> (i32, i32) {
    %c0_i32 = arith.constant 0 : i32
    %c0_i32_0 = arith.constant 0 : i32
    return %arg0, %c0_i32 : i32, i32
  }
  func.func @transform_1(%arg0: i32) -> (i32, i32) {
    %c0_i32 = arith.constant 0 : i32
    %c0_i32_0 = arith.constant 0 : i32
    return %arg0, %c0_i32 : i32, i32
  }
  func.func @transform_2(%arg0: i32) -> (i32, i32) {
    %c0_i32 = arith.constant 0 : i32
    %c0_i32_0 = arith.constant 0 : i32
    %c0_i32_1 = arith.constant 0 : i32
    return %c0_i32, %c0_i32_0 : i32, i32
  }
  func.func @transform_3(%arg0: i32) -> (i32, i32) {
    %c0_i32 = arith.constant 0 : i32
    %c0_i32_0 = arith.constant 0 : i32
    %c0_i32_1 = arith.constant 0 : i32
    return %c0_i32, %c0_i32_0 : i32, i32
  }
  func.func @transform_4(%arg0: i32) -> (i32, i32) {
    %c0_i32 = arith.constant 0 : i32
    %c0_i32_0 = arith.constant 0 : i32
    %c0_i32_1 = arith.constant 0 : i32
    return %c0_i32, %c0_i32_0 : i32, i32
  }
  func.func @transform_5(%arg0: i32) -> (i32, i32) {
    %c0_i32 = arith.constant 0 : i32
    %c0_i32_0 = arith.constant 0 : i32
    %c0_i32_1 = arith.constant 0 : i32
    return %c0_i32, %c0_i32_0 : i32, i32
  }
  func.func @transform_6(%arg0: i32) -> (i32, i32) {
    %c0_i32 = arith.constant 0 : i32
    %c0_i32_0 = arith.constant 0 : i32
    %c0_i32_1 = arith.constant 0 : i32
    return %c0_i32, %c0_i32_0 : i32, i32
  }
  func.func @transform_7(%arg0: i32) -> (i32, i32) {
    %c0_i32 = arith.constant 0 : i32
    %c0_i32_0 = arith.constant 0 : i32
    %c0_i32_1 = arith.constant 0 : i32
    return %c0_i32, %c0_i32_0 : i32, i32
  }
  func.func @transform_8(%arg0: i32) -> (i32, i32) {
    %c0_i32 = arith.constant 0 : i32
    %c0_i32_0 = arith.constant 0 : i32
    %c0_i32_1 = arith.constant 0 : i32
    return %c0_i32, %c0_i32_0 : i32, i32
  }
  func.func @transform_9(%arg0: i32) -> (i32, i32) {
    %c0_i32 = arith.constant 0 : i32
    %c0_i32_0 = arith.constant 0 : i32
    %c0_i32_1 = arith.constant 0 : i32
    return %c0_i32, %c0_i32_0 : i32, i32
  }
  func.func @transform_10(%arg0: i32) -> (i32, i32) {
    %c0_i32 = arith.constant 0 : i32
    %c0_i32_0 = arith.constant 0 : i32
    %c0_i32_1 = arith.constant 0 : i32
    return %c0_i32, %c0_i32_0 : i32, i32
  }
  func.func @transform_11(%arg0: i32) -> (i32, i32) {
    %c0_i32 = arith.constant 0 : i32
    %c0_i32_0 = arith.constant 0 : i32
    %c0_i32_1 = arith.constant 0 : i32
    return %c0_i32, %c0_i32_0 : i32, i32
  }
  func.func @transform_12(%arg0: i32) -> (i32, i32) {
    %c0_i32 = arith.constant 0 : i32
    %c0_i32_0 = arith.constant 0 : i32
    return %arg0, %c0_i32 : i32, i32
  }
  func.func @transform_13(%arg0: i32) -> (i32, i32) {
    %c0_i32 = arith.constant 0 : i32
    %c0_i32_0 = arith.constant 0 : i32
    return %arg0, %c0_i32 : i32, i32
  }
}

</mosaic_0001>

<llo_original>
// kernel: tpu_custom_call.1
$region0: #{tpu_custom_call.1}
  #allocation0 [shape = 'u32[]', space=smem, size = 0x4, offset = 0x4, fixed_abs, tag = 'smem constant byte address 0x4 - core index']
  #allocation1 [shape = 'u32[144,128]{1,0:T(1,128)}', space=vmem, size = 0x12000, scoped, tag = 'internal scratch']
  %s0 = inlined_call_operand.hbm [shape: f32[8,128], index: 0, kind: input, shape index: {}]
  %s1 = inlined_call_operand.hbm [shape: f32[8,128], index: 1, kind: input, shape index: {}]
  %s2 = inlined_call_operand.hbm [shape: f32[128,128], index: 2, kind: input, shape index: {}]
  %s3 = inlined_call_operand.vmem [shape: f32[1,128], index: 3, kind: input, shape index: {}]
  %s4 = inlined_call_operand.hbm [shape: f32[128,128], index: 4, kind: input, shape index: {}]
  %s5 = inlined_call_operand.vmem [shape: f32[1,128], index: 5, kind: input, shape index: {}]
  %s6 = inlined_call_operand.hbm [shape: f32[128,256], index: 6, kind: input, shape index: {}]
  %s7 = inlined_call_operand.vmem [shape: f32[1,256], index: 7, kind: input, shape index: {}]
  %s8 = inlined_call_operand.hbm [shape: f32[128,128], index: 8, kind: input, shape index: {}]
  %s9 = inlined_call_operand.vmem [shape: f32[1,128], index: 9, kind: input, shape index: {}]
  %s10 = inlined_call_operand.hbm [shape: f32[128,128], index: 10, kind: input, shape index: {}]
  %s11 = inlined_call_operand.vmem [shape: f32[1,128], index: 11, kind: input, shape index: {}]
  %s12 = inlined_call_operand.hbm [shape: f32[8,128], index: 12, kind: output, shape index: {0}]
  %s13 = inlined_call_operand.hbm [shape: f32[8,256], index: 13, kind: output, shape index: {1}]
  %14 = xla_tuple %s12, %s13
  %s15 = sld [smem:[#allocation0]]
  $region94: #{tpu_custom_call.1} parent=0
    _
  %s17 = ssub.s32 1, %s15
  %s18 = scalar_select 0, %s17, %s15
  $region1: #{tpu_custom_call.1} parent=0
    #allocation2 [shape = 'u8[4096]{0}', space=vmem, size = 0x1000, scoped, tag = 'input window, operand 0, single buffered']
    #allocation3 [shape = 's32[1]{0}', space=sflag, size = 0x4, scoped, tag = 'scoped memory for tpu_custom_call.1']
    #allocation4 [shape = 's32[1]{0}', space=sflag, size = 0x4, scoped, tag = 'scoped memory for tpu_custom_call.1']
    #allocation5 [shape = 'u8[4096]{0}', space=vmem, size = 0x1000, scoped, tag = 'input window, operand 1, single buffered']
    #allocation6 [shape = 's32[1]{0}', space=sflag, size = 0x4, scoped, tag = 'scoped memory for tpu_custom_call.1']
    #allocation7 [shape = 'u8[65536]{0}', space=vmem, size = 0x10000, scoped, tag = 'input window, operand 2, single buffered']
    #allocation8 [shape = 'u8[65536]{0}', space=vmem, size = 0x10000, scoped, tag = 'input window, operand 4, single buffered']
    #allocation9 [shape = 's32[1]{0}', space=sflag, size = 0x4, scoped, tag = 'scoped memory for tpu_custom_call.1']
    #allocation10 [shape = 'u8[131072]{0}', space=vmem, size = 0x20000, scoped, tag = 'input window, operand 6, single buffered']
    #allocation11 [shape = 'u8[65536]{0}', space=vmem, size = 0x10000, scoped, tag = 'input window, operand 8, single buffered']
    #allocation12 [shape = 's32[1]{0}', space=sflag, size = 0x4, scoped, tag = 'scoped memory for tpu_custom_call.1']
    #allocation13 [shape = 'u8[65536]{0}', space=vmem, size = 0x10000, scoped, tag = 'input window, operand 10, single buffered']
    #allocation14 [shape = 'u8[4096]{0}', space=vmem, size = 0x1000, scoped, tag = 'output window, operand 0, single buffered']
    #allocation15 [shape = 'u8[8192]{0}', space=vmem, size = 0x2000, scoped, tag = 'output window, operand 1, single buffered']
    #allocation16 [shape = 's32[1]{0}', space=sflag, size = 0x4, scoped, tag = 'scoped memory for tpu_custom_call.1']
    %19 = vsyncpa [#allocation3], 0
    %20 = vsyncpa [#allocation6], 0
    %21 = vsyncpa [#allocation9], 0
    %22 = vsyncpa [#allocation12], 0
    %23 = vsyncpa [#allocation4], 0
    %24 = vsyncpa [#allocation16], 0
    // Predicated region
    $region2: #{tpu_custom_call.1} parent=1 // pred_check
      _
    $region3: #{tpu_custom_call.1} parent=1 // pred_check_branch
      %26 = sbr.rel (0) target = $region5
    $region4: #{tpu_custom_call.1} parent=1 // pred_region
      %s28 = ssub.s32 128, 128
      %29 = vsyncadd [#allocation3], %s28
      %s31 = sshll.u32 [#allocation2], 4
      %s32 = int_to_ptr.vmem [resolvable:$true] %s31
      %34 = dma.hbm_to_vmem [thread:$0]  %s0, 128, %s32, [#allocation3]
    $region5: #{tpu_custom_call.1} parent=1 // pred_fallthru
      _
    // Predicated region
    $region6: #{tpu_custom_call.1} parent=1 // pred_check
      _
    $region7: #{tpu_custom_call.1} parent=1 // pred_check_branch
      %36 = sbr.rel (0) target = $region9
    $region8: #{tpu_custom_call.1} parent=1 // pred_region
      %s38 = ssub.s32 128, 128
      %39 = vsyncadd [#allocation6], %s38
      %s41 = sshll.u32 [#allocation5], 4
      %s42 = int_to_ptr.vmem [resolvable:$true] %s41
      %44 = dma.hbm_to_vmem [thread:$0]  %s1, 128, %s42, [#allocation6]
    $region9: #{tpu_custom_call.1} parent=1 // pred_fallthru
      _
    // Predicated region
    $region10: #{tpu_custom_call.1} parent=1 // pred_check
      _
    $region11: #{tpu_custom_call.1} parent=1 // pred_check_branch
      %46 = sbr.rel (0) target = $region13
    $region12: #{tpu_custom_call.1} parent=1 // pred_region
      %s48 = ssub.s32 2048, 2048
      %49 = vsyncadd [#allocation6], %s48
      %s50 = sshll.u32 [#allocation7], 4
      %s51 = int_to_ptr.vmem [resolvable:$true] %s50
      %56 = dma.hbm_to_vmem [thread:$0]  %s2, 2048, %s51, [#allocation6], 128, 128, 8
    $region13: #{tpu_custom_call.1} parent=1 // pred_fallthru
      _
    // Predicated region
    $region14: #{tpu_custom_call.1} parent=1 // pred_check
      _
    $region15: #{tpu_custom_call.1} parent=1 // pred_check_branch
      %58 = sbr.rel (0) target = $region17
    $region16: #{tpu_custom_call.1} parent=1 // pred_region
      _
    $region17: #{tpu_custom_call.1} parent=1 // pred_fallthru
      _
    // Predicated region
    $region18: #{tpu_custom_call.1} parent=1 // pred_check
      _
    $region19: #{tpu_custom_call.1} parent=1 // pred_check_branch
      %60 = sbr.rel (0) target = $region21
    $region20: #{tpu_custom_call.1} parent=1 // pred_region
      %s62 = ssub.s32 2048, 2048
      %63 = vsyncadd [#allocation9], %s62
      %s64 = sshll.u32 [#allocation8], 4
      %s65 = int_to_ptr.vmem [resolvable:$true] %s64
      %70 = dma.hbm_to_vmem [thread:$0]  %s4, 2048, %s65, [#allocation9], 128, 128, 8
    $region21: #{tpu_custom_call.1} parent=1 // pred_fallthru
      _
    // Predicated region
    $region22: #{tpu_custom_call.1} parent=1 // pred_check
      _
    $region23: #{tpu_custom_call.1} parent=1 // pred_check_branch
      %72 = sbr.rel (0) target = $region25
    $region24: #{tpu_custom_call.1} parent=1 // pred_region
      _
    $region25: #{tpu_custom_call.1} parent=1 // pred_fallthru
      _
    // Predicated region
    $region26: #{tpu_custom_call.1} parent=1 // pred_check
      _
    $region27: #{tpu_custom_call.1} parent=1 // pred_check_branch
      %74 = sbr.rel (0) target = $region29
    $region28: #{tpu_custom_call.1} parent=1 // pred_region
      %s76 = ssub.s32 4096, 4096
      %77 = vsyncadd [#allocation9], %s76
      %s78 = sshll.u32 [#allocation10], 4
      %s79 = int_to_ptr.vmem [resolvable:$true] %s78
      %84 = dma.hbm_to_vmem [thread:$0]  %s6, 4096, %s79, [#allocation9], 256, 256, 16
    $region29: #{tpu_custom_call.1} parent=1 // pred_fallthru
      _
    // Predicated region
    $region30: #{tpu_custom_call.1} parent=1 // pred_check
      _
    $region31: #{tpu_custom_call.1} parent=1 // pred_check_branch
      %86 = sbr.rel (0) target = $region33
    $region32: #{tpu_custom_call.1} parent=1 // pred_region
      _
    $region33: #{tpu_custom_call.1} parent=1 // pred_fallthru
      _
    // Predicated region
    $region34: #{tpu_custom_call.1} parent=1 // pred_check
      _
    $region35: #{tpu_custom_call.1} parent=1 // pred_check_branch
      %88 = sbr.rel (0) target = $region37
    $region36: #{tpu_custom_call.1} parent=1 // pred_region
      %s90 = ssub.s32 2048, 2048
      %91 = vsyncadd [#allocation12], %s90
      %s92 = sshll.u32 [#allocation11], 4
      %s93 = int_to_ptr.vmem [resolvable:$true] %s92
      %98 = dma.hbm_to_vmem [thread:$0]  %s8, 2048, %s93, [#allocation12], 128, 128, 8
    $region37: #{tpu_custom_call.1} parent=1 // pred_fallthru
      _
    // Predicated region
    $region38: #{tpu_custom_call.1} parent=1 // pred_check
      _
    $region39: #{tpu_custom_call.1} parent=1 // pred_check_branch
      %100 = sbr.rel (0) target = $region41
    $region40: #{tpu_custom_call.1} parent=1 // pred_region
      _
    $region41: #{tpu_custom_call.1} parent=1 // pred_fallthru
      _
    // Predicated region
    $region42: #{tpu_custom_call.1} parent=1 // pred_check
      _
    $region43: #{tpu_custom_call.1} parent=1 // pred_check_branch
      %102 = sbr.rel (0) target = $region45
    $region44: #{tpu_custom_call.1} parent=1 // pred_region
      %s104 = ssub.s32 2048, 2048
      %105 = vsyncadd [#allocation12], %s104
      %s106 = sshll.u32 [#allocation13], 4
      %s107 = int_to_ptr.vmem [resolvable:$true] %s106
      %112 = dma.hbm_to_vmem [thread:$0]  %s10, 2048, %s107, [#allocation12], 128, 128, 8
    $region45: #{tpu_custom_call.1} parent=1 // pred_fallthru
      _
    // Predicated region
    $region46: #{tpu_custom_call.1} parent=1 // pred_check
      _
    $region47: #{tpu_custom_call.1} parent=1 // pred_check_branch
      %114 = sbr.rel (0) target = $region49
    $region48: #{tpu_custom_call.1} parent=1 // pred_region
      _
    $region49: #{tpu_custom_call.1} parent=1 // pred_fallthru
      _
    // Predicated region
    $region50: #{tpu_custom_call.1} parent=1 // pred_check
      _
    $region51: #{tpu_custom_call.1} parent=1 // pred_check_branch
      %116 = sbr.rel (0) target = $region53
    $region52: #{tpu_custom_call.1} parent=1 // pred_region
      %117 = dma.done [#allocation3], 128
    $region53: #{tpu_custom_call.1} parent=1 // pred_fallthru
      _
    // Predicated region
    $region54: #{tpu_custom_call.1} parent=1 // pred_check
      _
    $region55: #{tpu_custom_call.1} parent=1 // pred_check_branch
      %119 = sbr.rel (0) target = $region57
    $region56: #{tpu_custom_call.1} parent=1 // pred_region
      %120 = dma.done [#allocation6], 128
    $region57: #{tpu_custom_call.1} parent=1 // pred_fallthru
      _
    // Predicated region
    $region58: #{tpu_custom_call.1} parent=1 // pred_check
      _
    $region59: #{tpu_custom_call.1} parent=1 // pred_check_branch
      %122 = sbr.rel (0) target = $region61
    $region60: #{tpu_custom_call.1} parent=1 // pred_region
      %123 = dma.done [#allocation6], 2048
    $region61: #{tpu_custom_call.1} parent=1 // pred_fallthru
      _
    // Predicated region
    $region62: #{tpu_custom_call.1} parent=1 // pred_check
      _
    $region63: #{tpu_custom_call.1} parent=1 // pred_check_branch
      %125 = sbr.rel (0) target = $region65
    $region64: #{tpu_custom_call.1} parent=1 // pred_region
      %126 = dma.done [#allocation9], 2048
    $region65: #{tpu_custom_call.1} parent=1 // pred_fallthru
      _
    // Predicated region
    $region66: #{tpu_custom_call.1} parent=1 // pred_check
      _
    $region67: #{tpu_custom_call.1} parent=1 // pred_check_branch
      %128 = sbr.rel (0) target = $region69
    $region68: #{tpu_custom_call.1} parent=1 // pred_region
      %129 = dma.done [#allocation9], 4096
    $region69: #{tpu_custom_call.1} parent=1 // pred_fallthru
      _
    // Predicated region
    $region70: #{tpu_custom_call.1} parent=1 // pred_check
      _
    $region71: #{tpu_custom_call.1} parent=1 // pred_check_branch
      %131 = sbr.rel (0) target = $region73
    $region72: #{tpu_custom_call.1} parent=1 // pred_region
      %132 = dma.done [#allocation12], 2048
    $region73: #{tpu_custom_call.1} parent=1 // pred_fallthru
      _
    // Predicated region
    $region74: #{tpu_custom_call.1} parent=1 // pred_check
      _
    $region75: #{tpu_custom_call.1} parent=1 // pred_check_branch
      %134 = sbr.rel (0) target = $region77
    $region76: #{tpu_custom_call.1} parent=1 // pred_region
      %135 = dma.done [#allocation12], 2048
    $region77: #{tpu_custom_call.1} parent=1 // pred_fallthru
      _
    %v136 = vld [vmem:[#allocation2] sm:$0xff]
    %v137 = vld [vmem:[#allocation7] sm:$0xff]
    %v138 = vld [vmem:[#allocation7 + $0x8] sm:$0xff]
    %v139 = vld [vmem:[#allocation7 + $0x10] sm:$0xff]
    %v140 = vld [vmem:[#allocation7 + $0x18] sm:$0xff]
    %v141 = vld [vmem:[#allocation7 + $0x20] sm:$0xff]
    %v142 = vld [vmem:[#allocation7 + $0x28] sm:$0xff]
    %v143 = vld [vmem:[#allocation7 + $0x30] sm:$0xff]
    %v144 = vld [vmem:[#allocation7 + $0x38] sm:$0xff]
    %v145 = vld [vmem:[#allocation7 + $0x40] sm:$0xff]
    %v146 = vld [vmem:[#allocation7 + $0x48] sm:$0xff]
    %v147 = vld [vmem:[#allocation7 + $0x50] sm:$0xff]
    %v148 = vld [vmem:[#allocation7 + $0x58] sm:$0xff]
    %v149 = vld [vmem:[#allocation7 + $0x60] sm:$0xff]
    %v150 = vld [vmem:[#allocation7 + $0x68] sm:$0xff]
    %v151 = vld [vmem:[#allocation7 + $0x70] sm:$0xff]
    %v152 = vld [vmem:[#allocation7 + $0x78] sm:$0xff]
    %v153 = vld [vmem:[%s3] sm:$0x1]
    %v155 = vlaneseq
    %v156 = vshrl.u32 %v155, 7
    %v157 = vsub.s32 0, %v156
    %v158 = vrot.slane %v153, %v157
    %160 = vmatprep.subr.mxu0 0.0
    %161 = vmatpush1.msra.mxu0 %v152
    %162 = vmatprep.subr.mxu0 0.0
    %163 = vmatpush1.msra.mxu0 %v151
    %164 = vmatprep.subr.mxu0 0.0
    %165 = vmatpush1.msra.mxu0 %v150
    %166 = vmatprep.subr.mxu0 0.0
    %167 = vmatpush1.msra.mxu0 %v149
    %168 = vmatprep.subr.mxu0 0.0
    %169 = vmatpush1.msra.mxu0 %v148
    %170 = vmatprep.subr.mxu0 0.0
    %171 = vmatpush1.msra.mxu0 %v147
    %172 = vmatprep.subr.mxu0 0.0
    %173 = vmatpush1.msra.mxu0 %v146
    %174 = vmatprep.subr.mxu0 0.0
    %175 = vmatpush1.msra.mxu0 %v145
    %176 = vmatprep.subr.mxu0 0.0
    %177 = vmatpush1.msra.mxu0 %v144
    %178 = vmatprep.subr.mxu0 0.0
    %179 = vmatpush1.msra.mxu0 %v143
    %180 = vmatprep.subr.mxu0 0.0
    %181 = vmatpush1.msra.mxu0 %v142
    %182 = vmatprep.subr.mxu0 0.0
    %183 = vmatpush1.msra.mxu0 %v141
    %184 = vmatprep.subr.mxu0 0.0
    %185 = vmatpush1.msra.mxu0 %v140
    %186 = vmatprep.subr.mxu0 0.0
    %187 = vmatpush1.msra.mxu0 %v139
    %188 = vmatprep.subr.mxu0 0.0
    %189 = vmatpush1.msra.mxu0 %v138
    %190 = vmatprep.subr.mxu0 0.0
    %191 = vmatpush1.msra.mxu0 %v137
    %192 = vmatprep.subr.mxu0 0.0
    %193 = vmatpush2.msra.mxu0 0.0
    %194 = vmatprep.subr.mxu0 0.0
    %195 = vmatpush2.msra.mxu0 0.0
    %196 = vmatprep.subr.mxu0 0.0
    %197 = vmatpush2.msra.mxu0 0.0
    %198 = vmatprep.subr.mxu0 0.0
    %199 = vmatpush2.msra.mxu0 0.0
    %200 = vmatprep.subr.mxu0 0.0
    %201 = vmatpush2.msra.mxu0 0.0
    %202 = vmatprep.subr.mxu0 0.0
    %203 = vmatpush2.msra.mxu0 0.0
    %204 = vmatprep.subr.mxu0 0.0
    %205 = vmatpush2.msra.mxu0 0.0
    %206 = vmatprep.subr.mxu0 0.0
    %207 = vmatpush2.msra.mxu0 0.0
    %208 = vmatprep.subr.mxu0 0.0
    %209 = vmatpush2.msra.mxu0 0.0
    %210 = vmatprep.subr.mxu0 0.0
    %211 = vmatpush2.msra.mxu0 0.0
    %212 = vmatprep.subr.mxu0 0.0
    %213 = vmatpush2.msra.mxu0 0.0
    %214 = vmatprep.subr.mxu0 0.0
    %215 = vmatpush2.msra.mxu0 0.0
    %216 = vmatprep.subr.mxu0 0.0
    %217 = vmatpush2.msra.mxu0 0.0
    %218 = vmatprep.subr.mxu0 0.0
    %219 = vmatpush2.msra.mxu0 0.0
    %220 = vmatprep.subr.mxu0 0.0
    %221 = vmatpush2.msra.mxu0 0.0
    %222 = vmatprep.subr.mxu0 0.0
    %223 = vmatpush2.msra.mxu0 0.0
    %224 = vmatprep.mubr.f32.mxu0 0.0
    %225 = vmatmul.mubr.f32.gmra.mxu0 %v136
    %v226 = vpop.f32.mrf.mxu0
    %v227 = vadd.f32 %v158, %v226
    %v228 = vpop.f32.mrf.mxu0
    %229 = vdwg.mxu0
    %v230 = vmax.f32 %v227, 0.0
    %v231 = vld [vmem:[#allocation8] sm:$0xff]
    %v232 = vld [vmem:[#allocation8 + $0x8] sm:$0xff]
    %v233 = vld [vmem:[#allocation8 + $0x10] sm:$0xff]
    %v234 = vld [vmem:[#allocation8 + $0x18] sm:$0xff]
    %v235 = vld [vmem:[#allocation8 + $0x20] sm:$0xff]
    %v236 = vld [vmem:[#allocation8 + $0x28] sm:$0xff]
    %v237 = vld [vmem:[#allocation8 + $0x30] sm:$0xff]
    %v238 = vld [vmem:[#allocation8 + $0x38] sm:$0xff]
    %v239 = vld [vmem:[#allocation8 + $0x40] sm:$0xff]
    %v240 = vld [vmem:[#allocation8 + $0x48] sm:$0xff]
    %v241 = vld [vmem:[#allocation8 + $0x50] sm:$0xff]
    %v242 = vld [vmem:[#allocation8 + $0x58] sm:$0xff]
    %v243 = vld [vmem:[#allocation8 + $0x60] sm:$0xff]
    %v244 = vld [vmem:[#allocation8 + $0x68] sm:$0xff]
    %v245 = vld [vmem:[#allocation8 + $0x70] sm:$0xff]
    %v246 = vld [vmem:[#allocation8 + $0x78] sm:$0xff]
    %v247 = vld [vmem:[%s5] sm:$0x1]
    %v249 = vlaneseq
    %v250 = vshrl.u32 %v249, 7
    %v251 = vsub.s32 0, %v250
    %v252 = vrot.slane %v247, %v251
    %254 = vmatprep.subr.mxu0 0.0
    %255 = vmatpush1.msra.mxu0 %v246
    %256 = vmatprep.subr.mxu0 0.0
    %257 = vmatpush1.msra.mxu0 %v245
    %258 = vmatprep.subr.mxu0 0.0
    %259 = vmatpush1.msra.mxu0 %v244
    %260 = vmatprep.subr.mxu0 0.0
    %261 = vmatpush1.msra.mxu0 %v243
    %262 = vmatprep.subr.mxu0 0.0
    %263 = vmatpush1.msra.mxu0 %v242
    %264 = vmatprep.subr.mxu0 0.0
    %265 = vmatpush1.msra.mxu0 %v241
    %266 = vmatprep.subr.mxu0 0.0
    %267 = vmatpush1.msra.mxu0 %v240
    %268 = vmatprep.subr.mxu0 0.0
    %269 = vmatpush1.msra.mxu0 %v239
    %270 = vmatprep.subr.mxu0 0.0
    %271 = vmatpush1.msra.mxu0 %v238
    %272 = vmatprep.subr.mxu0 0.0
    %273 = vmatpush1.msra.mxu0 %v237
    %274 = vmatprep.subr.mxu0 0.0
    %275 = vmatpush1.msra.mxu0 %v236
    %276 = vmatprep.subr.mxu0 0.0
    %277 = vmatpush1.msra.mxu0 %v235
    %278 = vmatprep.subr.mxu0 0.0
    %279 = vmatpush1.msra.mxu0 %v234
    %280 = vmatprep.subr.mxu0 0.0
    %281 = vmatpush1.msra.mxu0 %v233
    %282 = vmatprep.subr.mxu0 0.0
    %283 = vmatpush1.msra.mxu0 %v232
    %284 = vmatprep.subr.mxu0 0.0
    %285 = vmatpush1.msra.mxu0 %v231
    %286 = vmatprep.subr.mxu0 0.0
    %287 = vmatpush2.msra.mxu0 0.0
    %288 = vmatprep.subr.mxu0 0.0
    %289 = vmatpush2.msra.mxu0 0.0
    %290 = vmatprep.subr.mxu0 0.0
    %291 = vmatpush2.msra.mxu0 0.0
    %292 = vmatprep.subr.mxu0 0.0
    %293 = vmatpush2.msra.mxu0 0.0
    %294 = vmatprep.subr.mxu0 0.0
    %295 = vmatpush2.msra.mxu0 0.0
    %296 = vmatprep.subr.mxu0 0.0
    %297 = vmatpush2.msra.mxu0 0.0
    %298 = vmatprep.subr.mxu0 0.0
    %299 = vmatpush2.msra.mxu0 0.0
    %300 = vmatprep.subr.mxu0 0.0
    %301 = vmatpush2.msra.mxu0 0.0
    %302 = vmatprep.subr.mxu0 0.0
    %303 = vmatpush2.msra.mxu0 0.0
    %304 = vmatprep.subr.mxu0 0.0
    %305 = vmatpush2.msra.mxu0 0.0
    %306 = vmatprep.subr.mxu0 0.0
    %307 = vmatpush2.msra.mxu0 0.0
    %308 = vmatprep.subr.mxu0 0.0
    %309 = vmatpush2.msra.mxu0 0.0
    %310 = vmatprep.subr.mxu0 0.0
    %311 = vmatpush2.msra.mxu0 0.0
    %312 = vmatprep.subr.mxu0 0.0
    %313 = vmatpush2.msra.mxu0 0.0
    %314 = vmatprep.subr.mxu0 0.0
    %315 = vmatpush2.msra.mxu0 0.0
    %316 = vmatprep.subr.mxu0 0.0
    %317 = vmatpush2.msra.mxu0 0.0
    %318 = vmatprep.mubr.f32.mxu0 0.0
    %319 = vmatmul.mubr.f32.gmra.mxu0 %v230
    %v320 = vpop.f32.mrf.mxu0
    %v321 = vadd.f32 %v252, %v320
    %v322 = vpop.f32.mrf.mxu0
    %323 = vdwg.mxu0
    %v324 = vmax.f32 %v321, 0.0
    %v325 = vld [vmem:[#allocation10] sm:$0xff]
    %v326 = vld [vmem:[#allocation10 + $0x8] sm:$0xff]
    %v327 = vld [vmem:[#allocation10 + $0x10] sm:$0xff]
    %v328 = vld [vmem:[#allocation10 + $0x18] sm:$0xff]
    %v329 = vld [vmem:[#allocation10 + $0x20] sm:$0xff]
    %v330 = vld [vmem:[#allocation10 + $0x28] sm:$0xff]
    %v331 = vld [vmem:[#allocation10 + $0x30] sm:$0xff]
    %v332 = vld [vmem:[#allocation10 + $0x38] sm:$0xff]
    %v333 = vld [vmem:[#allocation10 + $0x40] sm:$0xff]
    %v334 = vld [vmem:[#allocation10 + $0x48] sm:$0xff]
    %v335 = vld [vmem:[#allocation10 + $0x50] sm:$0xff]
    %v336 = vld [vmem:[#allocation10 + $0x58] sm:$0xff]
    %v337 = vld [vmem:[#allocation10 + $0x60] sm:$0xff]
    %v338 = vld [vmem:[#allocation10 + $0x68] sm:$0xff]
    %v339 = vld [vmem:[#allocation10 + $0x70] sm:$0xff]
    %v340 = vld [vmem:[#allocation10 + $0x78] sm:$0xff]
    %v341 = vld [vmem:[#allocation10 + $0x80] sm:$0xff]
    %v342 = vld [vmem:[#allocation10 + $0x88] sm:$0xff]
    %v343 = vld [vmem:[#allocation10 + $0x90] sm:$0xff]
    %v344 = vld [vmem:[#allocation10 + $0x98] sm:$0xff]
    %v345 = vld [vmem:[#allocation10 + $0xa0] sm:$0xff]
    %v346 = vld [vmem:[#allocation10 + $0xa8] sm:$0xff]
    %v347 = vld [vmem:[#allocation10 + $0xb0] sm:$0xff]
    %v348 = vld [vmem:[#allocation10 + $0xb8] sm:$0xff]
    %v349 = vld [vmem:[#allocation10 + $0xc0] sm:$0xff]
    %v350 = vld [vmem:[#allocation10 + $0xc8] sm:$0xff]
    %v351 = vld [vmem:[#allocation10 + $0xd0] sm:$0xff]
    %v352 = vld [vmem:[#allocation10 + $0xd8] sm:$0xff]
    %v353 = vld [vmem:[#allocation10 + $0xe0] sm:$0xff]
    %v354 = vld [vmem:[#allocation10 + $0xe8] sm:$0xff]
    %v355 = vld [vmem:[#allocation10 + $0xf0] sm:$0xff]
    %v356 = vld [vmem:[#allocation10 + $0xf8] sm:$0xff]
    %v357 = vld [vmem:[%s7] sm:$0x3]
    %v359 = vlaneseq
    %v360 = vshrl.u32 %v359, 7
    %v361 = vsub.s32 0, %v360
    %v362 = vrot.slane %v357, %v361
    %v363 = vlaneseq
    %v364 = vshrl.u32 %v363, 7
    %v365 = vsub.s32 1, %v364
    %v366 = vrot.slane %v357, %v365
    %369 = vmatprep.subr.mxu0 %v356
    %370 = vmatpush1.msra.mxu0 %v355
    %371 = vmatprep.subr.mxu0 %v354
    %372 = vmatpush1.msra.mxu0 %v353
    %373 = vmatprep.subr.mxu0 %v352
    %374 = vmatpush1.msra.mxu0 %v351
    %375 = vmatprep.subr.mxu0 %v350
    %376 = vmatpush1.msra.mxu0 %v349
    %377 = vmatprep.subr.mxu0 %v348
    %378 = vmatpush1.msra.mxu0 %v347
    %379 = vmatprep.subr.mxu0 %v346
    %380 = vmatpush1.msra.mxu0 %v345
    %381 = vmatprep.subr.mxu0 %v344
    %382 = vmatpush1.msra.mxu0 %v343
    %383 = vmatprep.subr.mxu0 %v342
    %384 = vmatpush1.msra.mxu0 %v341
    %385 = vmatprep.subr.mxu0 %v340
    %386 = vmatpush1.msra.mxu0 %v339
    %387 = vmatprep.subr.mxu0 %v338
    %388 = vmatpush1.msra.mxu0 %v337
    %389 = vmatprep.subr.mxu0 %v336
    %390 = vmatpush1.msra.mxu0 %v335
    %391 = vmatprep.subr.mxu0 %v334
    %392 = vmatpush1.msra.mxu0 %v333
    %393 = vmatprep.subr.mxu0 %v332
    %394 = vmatpush1.msra.mxu0 %v331
    %395 = vmatprep.subr.mxu0 %v330
    %396 = vmatpush1.msra.mxu0 %v329
    %397 = vmatprep.subr.mxu0 %v328
    %398 = vmatpush1.msra.mxu0 %v327
    %399 = vmatprep.subr.mxu0 %v326
    %400 = vmatpush1.msra.mxu0 %v325
    %401 = vmatprep.subr.mxu0 0.0
    %402 = vmatpush2.msra.mxu0 0.0
    %403 = vmatprep.subr.mxu0 0.0
    %404 = vmatpush2.msra.mxu0 0.0
    %405 = vmatprep.subr.mxu0 0.0
    %406 = vmatpush2.msra.mxu0 0.0
    %407 = vmatprep.subr.mxu0 0.0
    %408 = vmatpush2.msra.mxu0 0.0
    %409 = vmatprep.subr.mxu0 0.0
    %410 = vmatpush2.msra.mxu0 0.0
    %411 = vmatprep.subr.mxu0 0.0
    %412 = vmatpush2.msra.mxu0 0.0
    %413 = vmatprep.subr.mxu0 0.0
    %414 = vmatpush2.msra.mxu0 0.0
    %415 = vmatprep.subr.mxu0 0.0
    %416 = vmatpush2.msra.mxu0 0.0
    %417 = vmatprep.subr.mxu0 0.0
    %418 = vmatpush2.msra.mxu0 0.0
    %419 = vmatprep.subr.mxu0 0.0
    %420 = vmatpush2.msra.mxu0 0.0
    %421 = vmatprep.subr.mxu0 0.0
    %422 = vmatpush2.msra.mxu0 0.0
    %423 = vmatprep.subr.mxu0 0.0
    %424 = vmatpush2.msra.mxu0 0.0
    %425 = vmatprep.subr.mxu0 0.0
    %426 = vmatpush2.msra.mxu0 0.0
    %427 = vmatprep.subr.mxu0 0.0
    %428 = vmatpush2.msra.mxu0 0.0
    %429 = vmatprep.subr.mxu0 0.0
    %430 = vmatpush2.msra.mxu0 0.0
    %431 = vmatprep.subr.mxu0 0.0
    %432 = vmatpush2.msra.mxu0 0.0
    %433 = vmatprep.mubr.f32.mxu0 0.0
    %434 = vmatmul.mubr.f32.gmra.mxu0 %v324
    %v435 = vpop.f32.mrf.mxu0
    %v436 = vadd.f32 %v362, %v435
    %v437 = vpop.f32.mrf.mxu0
    %v438 = vadd.f32 %v366, %v437
    %439 = vdwg.mxu0
    %v440 = vmax.f32 %v438, 0.0
    %v441 = vand.u32 2147483647, %v438
    %v442 = vsub.f32 0.0, %v441
    %v443 = vmul.f32 %v442, 1.442695
    %v444 = vpow.pop %v443
    %v445 = vadd.f32 %v444, 1.0
    %v446 = vlog2.pop %v445
    %v447 = vmul.f32 %v446, 0.6931472
    %v448 = vmul.f32 -0.5, %v444
    %v449 = vadd.f32 %v448, 1.0
    %v450 = vmul.f32 %v449, %v444
    %v451 = vand.u32 2147483647, %v444
    %vm452 = vcmp.lt.f32.partialorder %v451, 0.0004427343
    %v453 = vsel %vm452, %v450, %v447
    %v454 = vadd.f32 %v440, %v453
    %v455 = vld [vmem:[#allocation5] sm:$0xff]
    %v456 = vrsqrt.pop %v454
    %v457 = vmul.f32 %v454, %v456
    %vm458 = vcmp.eq.f32.partialorder %v454, inf
    %v459 = vsel %vm458, %v454, %v457
    %vm460 = vcmp.eq.f32.partialorder %v454, 0.0
    %v461 = vand.u32 %v454, 2147483648
    %v462 = vsel %vm460, %v461, %v459
    %v463 = vmul.f32 %v455, %v462
    %v464 = vadd.f32 %v436, %v463
    %v465 = vld [vmem:[#allocation11] sm:$0xff]
    %v466 = vld [vmem:[#allocation11 + $0x8] sm:$0xff]
    %v467 = vld [vmem:[#allocation11 + $0x10] sm:$0xff]
    %v468 = vld [vmem:[#allocation11 + $0x18] sm:$0xff]
    %v469 = vld [vmem:[#allocation11 + $0x20] sm:$0xff]
    %v470 = vld [vmem:[#allocation11 + $0x28] sm:$0xff]
    %v471 = vld [vmem:[#allocation11 + $0x30] sm:$0xff]
    %v472 = vld [vmem:[#allocation11 + $0x38] sm:$0xff]
    %v473 = vld [vmem:[#allocation11 + $0x40] sm:$0xff]
    %v474 = vld [vmem:[#allocation11 + $0x48] sm:$0xff]
    %v475 = vld [vmem:[#allocation11 + $0x50] sm:$0xff]
    %v476 = vld [vmem:[#allocation11 + $0x58] sm:$0xff]
    %v477 = vld [vmem:[#allocation11 + $0x60] sm:$0xff]
    %v478 = vld [vmem:[#allocation11 + $0x68] sm:$0xff]
    %v479 = vld [vmem:[#allocation11 + $0x70] sm:$0xff]
    %v480 = vld [vmem:[#allocation11 + $0x78] sm:$0xff]
    %v481 = vld [vmem:[%s9] sm:$0x1]
    %v483 = vlaneseq
    %v484 = vshrl.u32 %v483, 7
    %v485 = vsub.s32 0, %v484
    %v486 = vrot.slane %v481, %v485
    %488 = vmatprep.subr.mxu0 0.0
    %489 = vmatpush1.msra.mxu0 %v480
    %490 = vmatprep.subr.mxu0 0.0
    %491 = vmatpush1.msra.mxu0 %v479
    %492 = vmatprep.subr.mxu0 0.0
    %493 = vmatpush1.msra.mxu0 %v478
    %494 = vmatprep.subr.mxu0 0.0
    %495 = vmatpush1.msra.mxu0 %v477
    %496 = vmatprep.subr.mxu0 0.0
    %497 = vmatpush1.msra.mxu0 %v476
    %498 = vmatprep.subr.mxu0 0.0
    %499 = vmatpush1.msra.mxu0 %v475
    %500 = vmatprep.subr.mxu0 0.0
    %501 = vmatpush1.msra.mxu0 %v474
    %502 = vmatprep.subr.mxu0 0.0
    %503 = vmatpush1.msra.mxu0 %v473
    %504 = vmatprep.subr.mxu0 0.0
    %505 = vmatpush1.msra.mxu0 %v472
    %506 = vmatprep.subr.mxu0 0.0
    %507 = vmatpush1.msra.mxu0 %v471
    %508 = vmatprep.subr.mxu0 0.0
    %509 = vmatpush1.msra.mxu0 %v470
    %510 = vmatprep.subr.mxu0 0.0
    %511 = vmatpush1.msra.mxu0 %v469
    %512 = vmatprep.subr.mxu0 0.0
    %513 = vmatpush1.msra.mxu0 %v468
    %514 = vmatprep.subr.mxu0 0.0
    %515 = vmatpush1.msra.mxu0 %v467
    %516 = vmatprep.subr.mxu0 0.0
    %517 = vmatpush1.msra.mxu0 %v466
    %518 = vmatprep.subr.mxu0 0.0
    %519 = vmatpush1.msra.mxu0 %v465
    %520 = vmatprep.subr.mxu0 0.0
    %521 = vmatpush2.msra.mxu0 0.0
    %522 = vmatprep.subr.mxu0 0.0
    %523 = vmatpush2.msra.mxu0 0.0
    %524 = vmatprep.subr.mxu0 0.0
    %525 = vmatpush2.msra.mxu0 0.0
    %526 = vmatprep.subr.mxu0 0.0
    %527 = vmatpush2.msra.mxu0 0.0
    %528 = vmatprep.subr.mxu0 0.0
    %529 = vmatpush2.msra.mxu0 0.0
    %530 = vmatprep.subr.mxu0 0.0
    %531 = vmatpush2.msra.mxu0 0.0
    %532 = vmatprep.subr.mxu0 0.0
    %533 = vmatpush2.msra.mxu0 0.0
    %534 = vmatprep.subr.mxu0 0.0
    %535 = vmatpush2.msra.mxu0 0.0
    %536 = vmatprep.subr.mxu0 0.0
    %537 = vmatpush2.msra.mxu0 0.0
    %538 = vmatprep.subr.mxu0 0.0
    %539 = vmatpush2.msra.mxu0 0.0
    %540 = vmatprep.subr.mxu0 0.0
    %541 = vmatpush2.msra.mxu0 0.0
    %542 = vmatprep.subr.mxu0 0.0
    %543 = vmatpush2.msra.mxu0 0.0
    %544 = vmatprep.subr.mxu0 0.0
    %545 = vmatpush2.msra.mxu0 0.0
    %546 = vmatprep.subr.mxu0 0.0
    %547 = vmatpush2.msra.mxu0 0.0
    %548 = vmatprep.subr.mxu0 0.0
    %549 = vmatpush2.msra.mxu0 0.0
    %550 = vmatprep.subr.mxu0 0.0
    %551 = vmatpush2.msra.mxu0 0.0
    %552 = vmatprep.mubr.f32.mxu0 0.0
    %553 = vmatmul.mubr.f32.gmra.mxu0 %v464
    %v554 = vpop.f32.mrf.mxu0
    %v555 = vadd.f32 %v486, %v554
    %v556 = vpop.f32.mrf.mxu0
    %557 = vdwg.mxu0
    %v558 = vmax.f32 %v555, 0.0
    %v559 = vld [vmem:[#allocation13] sm:$0xff]
    %v560 = vld [vmem:[#allocation13 + $0x8] sm:$0xff]
    %v561 = vld [vmem:[#allocation13 + $0x10] sm:$0xff]
    %v562 = vld [vmem:[#allocation13 + $0x18] sm:$0xff]
    %v563 = vld [vmem:[#allocation13 + $0x20] sm:$0xff]
    %v564 = vld [vmem:[#allocation13 + $0x28] sm:$0xff]
    %v565 = vld [vmem:[#allocation13 + $0x30] sm:$0xff]
    %v566 = vld [vmem:[#allocation13 + $0x38] sm:$0xff]
    %v567 = vld [vmem:[#allocation13 + $0x40] sm:$0xff]
    %v568 = vld [vmem:[#allocation13 + $0x48] sm:$0xff]
    %v569 = vld [vmem:[#allocation13 + $0x50] sm:$0xff]
    %v570 = vld [vmem:[#allocation13 + $0x58] sm:$0xff]
    %v571 = vld [vmem:[#allocation13 + $0x60] sm:$0xff]
    %v572 = vld [vmem:[#allocation13 + $0x68] sm:$0xff]
    %v573 = vld [vmem:[#allocation13 + $0x70] sm:$0xff]
    %v574 = vld [vmem:[#allocation13 + $0x78] sm:$0xff]
    %v575 = vld [vmem:[%s11] sm:$0x1]
    %v577 = vlaneseq
    %v578 = vshrl.u32 %v577, 7
    %v579 = vsub.s32 0, %v578
    %v580 = vrot.slane %v575, %v579
    %582 = vmatprep.subr.mxu0 0.0
    %583 = vmatpush1.msra.mxu0 %v574
    %584 = vmatprep.subr.mxu0 0.0
    %585 = vmatpush1.msra.mxu0 %v573
    %586 = vmatprep.subr.mxu0 0.0
    %587 = vmatpush1.msra.mxu0 %v572
    %588 = vmatprep.subr.mxu0 0.0
    %589 = vmatpush1.msra.mxu0 %v571
    %590 = vmatprep.subr.mxu0 0.0
    %591 = vmatpush1.msra.mxu0 %v570
    %592 = vmatprep.subr.mxu0 0.0
    %593 = vmatpush1.msra.mxu0 %v569
    %594 = vmatprep.subr.mxu0 0.0
    %595 = vmatpush1.msra.mxu0 %v568
    %596 = vmatprep.subr.mxu0 0.0
    %597 = vmatpush1.msra.mxu0 %v567
    %598 = vmatprep.subr.mxu0 0.0
    %599 = vmatpush1.msra.mxu0 %v566
    %600 = vmatprep.subr.mxu0 0.0
    %601 = vmatpush1.msra.mxu0 %v565
    %602 = vmatprep.subr.mxu0 0.0
    %603 = vmatpush1.msra.mxu0 %v564
    %604 = vmatprep.subr.mxu0 0.0
    %605 = vmatpush1.msra.mxu0 %v563
    %606 = vmatprep.subr.mxu0 0.0
    %607 = vmatpush1.msra.mxu0 %v562
    %608 = vmatprep.subr.mxu0 0.0
    %609 = vmatpush1.msra.mxu0 %v561
    %610 = vmatprep.subr.mxu0 0.0
    %611 = vmatpush1.msra.mxu0 %v560
    %612 = vmatprep.subr.mxu0 0.0
    %613 = vmatpush1.msra.mxu0 %v559
    %614 = vmatprep.subr.mxu0 0.0
    %615 = vmatpush2.msra.mxu0 0.0
    %616 = vmatprep.subr.mxu0 0.0
    %617 = vmatpush2.msra.mxu0 0.0
    %618 = vmatprep.subr.mxu0 0.0
    %619 = vmatpush2.msra.mxu0 0.0
    %620 = vmatprep.subr.mxu0 0.0
    %621 = vmatpush2.msra.mxu0 0.0
    %622 = vmatprep.subr.mxu0 0.0
    %623 = vmatpush2.msra.mxu0 0.0
    %624 = vmatprep.subr.mxu0 0.0
    %625 = vmatpush2.msra.mxu0 0.0
    %626 = vmatprep.subr.mxu0 0.0
    %627 = vmatpush2.msra.mxu0 0.0
    %628 = vmatprep.subr.mxu0 0.0
    %629 = vmatpush2.msra.mxu0 0.0
    %630 = vmatprep.subr.mxu0 0.0
    %631 = vmatpush2.msra.mxu0 0.0
    %632 = vmatprep.subr.mxu0 0.0
    %633 = vmatpush2.msra.mxu0 0.0
    %634 = vmatprep.subr.mxu0 0.0
    %635 = vmatpush2.msra.mxu0 0.0
    %636 = vmatprep.subr.mxu0 0.0
    %637 = vmatpush2.msra.mxu0 0.0
    %638 = vmatprep.subr.mxu0 0.0
    %639 = vmatpush2.msra.mxu0 0.0
    %640 = vmatprep.subr.mxu0 0.0
    %641 = vmatpush2.msra.mxu0 0.0
    %642 = vmatprep.subr.mxu0 0.0
    %643 = vmatpush2.msra.mxu0 0.0
    %644 = vmatprep.subr.mxu0 0.0
    %645 = vmatpush2.msra.mxu0 0.0
    %646 = vmatprep.mubr.f32.mxu0 0.0
    %647 = vmatmul.mubr.f32.gmra.mxu0 %v558
    %v648 = vpop.f32.mrf.mxu0
    %v649 = vadd.f32 %v580, %v648
    %v650 = vpop.f32.mrf.mxu0
    %651 = vdwg.mxu0
    %v652 = vxor.u32 %v649, 2147483648
    %v653 = vmul.f32 %v652, 1.442695
    %v654 = vpow.pop %v653
    %v655 = vadd.f32 %v654, 1.0
    %v656 = vrcp.pop %v655
    %v657 = vmul.f32 1.0, %v656
    %658 = vst [vmem:[#allocation14] sm:$0xff] %v657
    %659 = vst [vmem:[#allocation15] sm:$0xff] %v436
    %660 = vst [vmem:[#allocation15 + $0x8] sm:$0xff] %v454
    // Predicated region
    $region78: #{tpu_custom_call.1} parent=1 // pred_check
      _
    $region79: #{tpu_custom_call.1} parent=1 // pred_check_branch
      %662 = sbr.rel (0) target = $region81
    $region80: #{tpu_custom_call.1} parent=1 // pred_region
      %s664 = ssub.s32 128, 128
      %665 = vsyncadd [#allocation4], %s664
      %s667 = sshll.u32 [#allocation14], 4
      %s668 = int_to_ptr.vmem [resolvable:$true] %s667
      %670 = dma.vmem_to_hbm [thread:$0]  %s668, 128, %s12, [#allocation4]
    $region81: #{tpu_custom_call.1} parent=1 // pred_fallthru
      _
    // Predicated region
    $region82: #{tpu_custom_call.1} parent=1 // pred_check
      _
    $region83: #{tpu_custom_call.1} parent=1 // pred_check_branch
      %672 = sbr.rel (0) target = $region85
    $region84: #{tpu_custom_call.1} parent=1 // pred_region
      %s674 = ssub.s32 256, 256
      %675 = vsyncadd [#allocation16], %s674
      %s677 = sshll.u32 [#allocation15], 4
      %s678 = int_to_ptr.vmem [resolvable:$true] %s677
      %680 = dma.vmem_to_hbm [thread:$0]  %s678, 256, %s13, [#allocation16]
    $region85: #{tpu_custom_call.1} parent=1 // pred_fallthru
      _
    // Predicated region
    $region86: #{tpu_custom_call.1} parent=1 // pred_check
      _
    $region87: #{tpu_custom_call.1} parent=1 // pred_check_branch
      %682 = sbr.rel (0) target = $region89
    $region88: #{tpu_custom_call.1} parent=1 // pred_region
      %683 = dma.done [#allocation4], 128
    $region89: #{tpu_custom_call.1} parent=1 // pred_fallthru
      _
    // Predicated region
    $region90: #{tpu_custom_call.1} parent=1 // pred_check
      _
    $region91: #{tpu_custom_call.1} parent=1 // pred_check_branch
      %685 = sbr.rel (0) target = $region93
    $region92: #{tpu_custom_call.1} parent=1 // pred_region
      %686 = dma.done [#allocation16], 256
    $region93: #{tpu_custom_call.1} parent=1 // pred_fallthru
      _
    %687 = vsyncpa [#allocation3], 1
    %688 = vsyncpa [#allocation6], 1
    %689 = vsyncpa [#allocation9], 1
    %690 = vsyncpa [#allocation12], 1
    %691 = vsyncpa [#allocation4], 1
    %692 = vsyncpa [#allocation16], 1

</llo_original>
